<compile_context>
chip_gen: v6e
topology: v6e:2x2x1
jax: 0.10.0
libtpu: 0.0.40
codegen_flags: <defaults>
</compile_context>

<pallas_src>
import numpy as np
import jax
import jax.numpy as jnp
from jax import lax
from jax.experimental import pallas as pl
from jax.experimental.pallas import tpu as pltpu


def _round_up(x, m):
    return ((x + m - 1) // m) * m


def _cdiv(a, b):
    return -(-a // b)


def _tpu_vmem_bytes():
    try:
        cap = getattr(pltpu.get_tpu_info(), "vmem_capacity_bytes", None)
        if cap:
            return int(cap)
    except Exception:
        pass
    return 64 * 1024 * 1024                      # v7x-safe default


_VMEM_CAP = _tpu_vmem_bytes()
_VMEM_LIMIT = max(16 * 1024 * 1024,
                  min(int(_VMEM_CAP * 0.8), _VMEM_CAP - 8 * 1024 * 1024))


# ----------------------------------------------------------------------------
# Kernel 1: per-channel sum / sum-of-squares (training-mode BN batch stats).
# ----------------------------------------------------------------------------
def _stats_kernel(x_ref, sum_ref, sq_ref):
    @pl.when(pl.program_id(1) == 0)
    def _():
        sum_ref[...] = jnp.zeros_like(sum_ref)
        sq_ref[...] = jnp.zeros_like(sq_ref)

    x = x_ref[...].astype(jnp.float32)            # (tm_s, C), bf16 -> f32 accum
    tm, c = x.shape
    xg = x.reshape(tm // 8, 8, c)                 # leading-dim split only
    sum_ref[...] += jnp.sum(xg, axis=0)           # VALU adds, no cross-lane reduce
    sq_ref[...] += jnp.sum(xg * xg, axis=0)


def channel_sums(x_rows, tm_s, nsteps, splits=2):
    """Raw per-channel sum / sum-of-squares over x_rows (rows = splits*nsteps*tm_s)."""
    M, C = x_rows.shape
    assert M == splits * nsteps * tm_s
    sums, sqs = pl.pallas_call(
        _stats_kernel,
        out_shape=(jax.ShapeDtypeStruct((splits * 8, C), jnp.float32),
                   jax.ShapeDtypeStruct((splits * 8, C), jnp.float32)),
        grid_spec=pltpu.PrefetchScalarGridSpec(
            num_scalar_prefetch=0,
            grid=(splits, nsteps),
            in_specs=[pl.BlockSpec((tm_s, C), lambda p, i: (p * nsteps + i, 0))],
            out_specs=[pl.BlockSpec((8, C), lambda p, i: (p, 0)),
                       pl.BlockSpec((8, C), lambda p, i: (p, 0))]),
        compiler_params=pltpu.CompilerParams(
            dimension_semantics=("parallel", "arbitrary"),
            vmem_limit_bytes=_VMEM_LIMIT),
    )(x_rows)
    return jnp.sum(sums, axis=0), jnp.sum(sqs, axis=0)


# ----------------------------------------------------------------------------
# Kernel 2: fused BN(affine) + ReLU + 2x2 avg-pool + 1x1 conv (channel matmul).
# x_ref[k, p, c] = x[n, 2h+dh, 2w+dw, c] for phase k=(dh,dw), pooled pixel p.
# The 1/4 pooling factor is pre-folded into w_ref.
# ----------------------------------------------------------------------------
def _bn_relu_pool_conv_kernel(x_ref, scale_ref, shift_ref, w_ref, o_ref):
    _, tm, cin = x_ref.shape
    scale = jnp.broadcast_to(scale_ref[...], (tm, cin))   # hoisted once per tile
    shift = jnp.broadcast_to(shift_ref[...], (tm, cin))
    a = jnp.maximum(x_ref[0].astype(jnp.float32) * scale + shift, 0.0)
    a = a + jnp.maximum(x_ref[1].astype(jnp.float32) * scale + shift, 0.0)
    a = a + jnp.maximum(x_ref[2].astype(jnp.float32) * scale + shift, 0.0)
    a = a + jnp.maximum(x_ref[3].astype(jnp.float32) * scale + shift, 0.0)
    o_ref[...] = jnp.dot(a.astype(w_ref.dtype), w_ref[...],
                         preferred_element_type=jnp.float32).astype(o_ref.dtype)


def bn_relu_pool_conv(x_phases, scale, shift, w_mat, tm, ntiles):
    _, Pp, Cin = x_phases.shape
    Cout_pad = w_mat.shape[1]
    return pl.pallas_call(
        _bn_relu_pool_conv_kernel,
        out_shape=jax.ShapeDtypeStruct((Pp, Cout_pad), jnp.bfloat16),
        grid_spec=pltpu.PrefetchScalarGridSpec(
            num_scalar_prefetch=0,
            grid=(ntiles,),
            in_specs=[pl.BlockSpec((4, tm, Cin), lambda i: (0, i, 0)),
                      pl.BlockSpec((1, Cin), lambda i: (0, 0)),
                      pl.BlockSpec((1, Cin), lambda i: (0, 0)),
                      pl.BlockSpec((Cin, Cout_pad), lambda i: (0, 0))],
            out_specs=pl.BlockSpec((tm, Cout_pad), lambda i: (i, 0))),
        compiler_params=pltpu.CompilerParams(
            dimension_semantics=("parallel",),
            vmem_limit_bytes=_VMEM_LIMIT),
    )(x_phases, scale.reshape(1, Cin), shift.reshape(1, Cin), w_mat)


def _pick_row_tile(Cin, Cout_pad, budget_bytes, tm_cap=2048):
    """Largest pooled-row tile whose double-buffered footprint fits the budget."""
    def footprint(tm):
        # double-buffered bf16 phase input + double-buffered bf16 output
        return 2 * 4 * tm * Cin * 2 + 2 * tm * Cout_pad * 2
    tm = tm_cap
    while tm > 8 and footprint(tm) > budget_bytes:
        tm //= 2
    return max(8, tm)


def _choose_grid(P, tm_max):
    """Even tile count (>=2) so both v7x TensorCores get balanced work."""
    ntiles = max(2, _cdiv(P, tm_max))
    if ntiles % 2:
        ntiles += 1
    tm = min(tm_max, _round_up(_cdiv(P, ntiles), 8))
    ntiles = _cdiv(P, tm)
    if ntiles % 2:
        ntiles += 1
    return tm, ntiles, ntiles * tm


# ----------------------------------------------------------------------------
# Wrapper: TransitionBlock.forward, NCHW in / NCHW out.
# ----------------------------------------------------------------------------
def transition_block_forward(x_nchw, gamma, beta, w_conv, eps=1e-5):
    N, Cin, H, W = x_nchw.shape
    Cout = w_conv.shape[0]
    Hp, Wp = H // 2, W // 2                       # avg_pool2d(2): floor
    P = N * Hp * Wp

    # Single fused layout pass: NCHW -> (phase, pooled-pixel, channel), bf16.
    x_phases = jnp.transpose(
        x_nchw[:, :, :2 * Hp, :2 * Wp].reshape(N, Cin, Hp, 2, Wp, 2),
        (3, 5, 0, 2, 4, 1)).reshape(4, P, Cin).astype(jnp.bfloat16)

    # 1x1 conv weight -> (Cin, Cout_pad): pooling 1/4 folded in, bf16, lane-dense.
    w_mat = (jnp.transpose(w_conv[:, :, 0, 0]) * 0.25).astype(jnp.bfloat16)
    Cout_pad = _round_up(Cout, 128)
    if Cout_pad != Cout:
        w_mat = jnp.pad(w_mat, ((0, 0), (0, Cout_pad - Cout)))

    # Tile sizing: generation-aware VMEM budget, resident weight/scale/shift counted.
    fixed = 2 * Cin * Cout_pad * 2 + 4 * Cin * 4
    budget = max(1 << 20, _VMEM_LIMIT - fixed - (4 << 20))
    tm, ntiles, Pp = _choose_grid(P, _pick_row_tile(Cin, Cout_pad, budget))
    if Pp != P:
        x_phases = jnp.pad(x_phases, ((0, 0), (0, Pp - P), (0, 0)))  # zero rows

    # BN batch statistics (training-mode) from the same bf16 buffer (pad rows = 0).
    s, sq = channel_sums(x_phases.reshape(4 * Pp, Cin), tm_s=2 * tm, nsteps=ntiles)
    if H % 2:   # rows the pool drops still count toward BN statistics
        xr = x_nchw[:, :, 2 * Hp:, :].astype(jnp.float32)
        s = s + jnp.sum(xr, axis=(0, 2, 3))
        sq = sq + jnp.sum(xr * xr, axis=(0, 2, 3))
    if W % 2:
        xc = x_nchw[:, :, :2 * Hp, 2 * Wp:].astype(jnp.float32)
        s = s + jnp.sum(xc, axis=(0, 2, 3))
        sq = sq + jnp.sum(xc * xc, axis=(0, 2, 3))
    count = float(N * H * W)
    mean = s / count
    var = jnp.maximum(sq / count - mean * mean, 0.0)   # clamp: cancellation guard
    # TODO(synk): E[x^2]-mean^2 in f32 can lose precision when |mean| >> std over
    # very large N*H*W; switch to shifted / Welford combine if tolerance tightens.

    scale = (gamma / jnp.sqrt(var + eps)).astype(jnp.float32)
    shift = (beta - mean * scale).astype(jnp.float32)

    out = bn_relu_pool_conv(x_phases, scale, shift, w_mat, tm, ntiles)
    out = out[:P, :Cout].reshape(N, Hp, Wp, Cout)
    # TODO(synk): if the downstream DenseNet block can consume NHWC / bf16, skip
    # this final layout pass and dtype upcast.
    return jnp.transpose(out, (0, 3, 1, 2)).astype(jnp.float32)


# ----------------------------------------------------------------------------
# Pure-JAX reference (mirrors the PyTorch module, training-mode BN, f32 math).
# ----------------------------------------------------------------------------
def ref_forward(x, gamma, beta, w, eps=1e-5):
    m = jnp.mean(x, axis=(0, 2, 3))
    v = jnp.var(x, axis=(0, 2, 3))
    s = (gamma / jnp.sqrt(v + eps))[None, :, None, None]
    a = jnp.maximum((x - m[None, :, None, None]) * s + beta[None, :, None, None], 0.0)
    y = lax.conv_general_dilated(a, w, (1, 1), 'VALID',
                                 dimension_numbers=('NCHW', 'OIHW', 'NCHW'))
    n, co, h, wd = y.shape
    y = y[:, :, :2 * (h // 2), :2 * (wd // 2)]
    return y.reshape(n, co, h // 2, 2, wd // 2, 2).mean(axis=(3, 5))


if __name__ == "__main__":
    key = jax.random.PRNGKey(0)
    N, Cin, H, W = 2, 4, 16, 16
    Cout = 8                                      # out_planes
    # dropRate = 0.0  (dropout branch not taken)

    k0, k1, k2, k3 = jax.random.split(key, 4)
    x = jax.random.normal(k0, (N, Cin, H, W), jnp.float32)
    gamma = jax.random.uniform(k1, (Cin,), jnp.float32, 0.5, 1.5)
    beta = 0.1 * jax.random.normal(k2, (Cin,), jnp.float32)
    stdv = 1.0 / (Cin ** 0.5)
    w = jax.random.uniform(k3, (Cout, Cin, 1, 1), jnp.float32, -stdv, stdv)

    out = transition_block_forward(x, gamma, beta, w)
    out = jax.block_until_ready(out)

    ref = ref_forward(x, gamma, beta, w)
    # Tolerance reflects the bf16 activation stream (inputs / matmul operands /
    # kernel output); all reductions and BN math accumulate in f32.
    np.testing.assert_allclose(np.asarray(out), np.asarray(ref), rtol=3e-2, atol=3e-2)
    print("KERNEL_OK")
</pallas_src>

<mosaic_0001>
module attributes {stable_mosaic.version = 11 : i64} {
  func.func @_stats_kernel(%arg0: i32, %arg1: i32, %arg2: memref<128x4xbf16, #tpu.memory_space<vmem>>, %arg3: memref<8x4xf32, #tpu.memory_space<vmem>>, %arg4: memref<8x4xf32, #tpu.memory_space<vmem>>) attributes {dimension_semantics = [#tpu.dimension_semantics<parallel>, #tpu.dimension_semantics<arbitrary>], iteration_bounds = array<i64: 2, 2>, scalar_prefetch = 0 : i64, scratch_operands = 0 : i64, tpu.core_type = #tpu.core_type<tc>, window_params = [{transform_indices = @transform_0, window_bounds = array<i64: 128, 4>}, {transform_indices = @transform_1, window_bounds = array<i64: 8, 4>}, {transform_indices = @transform_2, window_bounds = array<i64: 8, 4>}]} {
    %c0_i32 = arith.constant 0 : i32
    %0 = arith.cmpi eq, %arg1, %c0_i32 : i32
    %1 = arith.extui %0 : i1 to i32
    %c0_i32_0 = arith.constant 0 : i32
    %2 = arith.cmpi ne, %1, %c0_i32_0 : i32
    scf.if %2 {
      %cst_11 = arith.constant 0.000000e+00 : f32
      %15 = vector.broadcast %cst_11 : f32 to vector<8x4xf32>
      %c0_12 = arith.constant 0 : index
      %c0_13 = arith.constant 0 : index
      %16 = vector.load %arg3[%c0_12, %c0_13] : memref<8x4xf32, #tpu.memory_space<vmem>>, vector<8x4xf32>
      tpu.vector_store %arg3[%c0_12, %c0_13], %15 {strides = array<i32>} : memref<8x4xf32, #tpu.memory_space<vmem>>, vector<8x4xf32>,
      %cst_14 = arith.constant 0.000000e+00 : f32
      %17 = vector.broadcast %cst_14 : f32 to vector<8x4xf32>
      %c0_15 = arith.constant 0 : index
      %c0_16 = arith.constant 0 : index
      %18 = vector.load %arg4[%c0_15, %c0_16] : memref<8x4xf32, #tpu.memory_space<vmem>>, vector<8x4xf32>
      tpu.vector_store %arg4[%c0_15, %c0_16], %17 {strides = array<i32>} : memref<8x4xf32, #tpu.memory_space<vmem>>, vector<8x4xf32>,
    } else {
    }
    %c0 = arith.constant 0 : index
    %c0_1 = arith.constant 0 : index
    %3 = vector.load %arg2[%c0, %c0_1] : memref<128x4xbf16, #tpu.memory_space<vmem>>, vector<128x4xbf16>
    %4 = arith.extf %3 : vector<128x4xbf16> to vector<128x4xf32>
    %5 = vector.shape_cast %4 : vector<128x4xf32> to vector<16x8x4xf32>
    %c0_2 = arith.constant 0 : index
    %c0_3 = arith.constant 0 : index
    %6 = vector.load %arg3[%c0_2, %c0_3] : memref<8x4xf32, #tpu.memory_space<vmem>>, vector<8x4xf32>
    %cst = arith.constant dense<0.000000e+00> : vector<8x4xf32>
    %7 = vector.multi_reduction <add>, %5, %cst [0] : vector<16x8x4xf32> to vector<8x4xf32>
    %8 = arith.addf %6, %7 : vector<8x4xf32>
    %c0_4 = arith.constant 0 : index
    %c0_5 = arith.constant 0 : index
    %9 = vector.load %arg3[%c0_4, %c0_5] : memref<8x4xf32, #tpu.memory_space<vmem>>, vector<8x4xf32>
    tpu.vector_store %arg3[%c0_4, %c0_5], %8 {strides = array<i32>} : memref<8x4xf32, #tpu.memory_space<vmem>>, vector<8x4xf32>,
    %c0_6 = arith.constant 0 : index
    %c0_7 = arith.constant 0 : index
    %10 = vector.load %arg4[%c0_6, %c0_7] : memref<8x4xf32, #tpu.memory_space<vmem>>, vector<8x4xf32>
    %11 = arith.mulf %5, %5 : vector<16x8x4xf32>
    %cst_8 = arith.constant dense<0.000000e+00> : vector<8x4xf32>
    %12 = vector.multi_reduction <add>, %11, %cst_8 [0] : vector<16x8x4xf32> to vector<8x4xf32>
    %13 = arith.addf %10, %12 : vector<8x4xf32>
    %c0_9 = arith.constant 0 : index
    %c0_10 = arith.constant 0 : index
    %14 = vector.load %arg4[%c0_9, %c0_10] : memref<8x4xf32, #tpu.memory_space<vmem>>, vector<8x4xf32>
    tpu.vector_store %arg4[%c0_9, %c0_10], %13 {strides = array<i32>} : memref<8x4xf32, #tpu.memory_space<vmem>>, vector<8x4xf32>,
    return
  }
  func.func @transform_0(%arg0: i32, %arg1: i32) -> (i32, i32) {
    %c2_i32 = arith.constant 2 : i32
    %0 = arith.muli %arg0, %c2_i32 : i32
    %1 = arith.addi %0, %arg1 : i32
    %c0_i32 = arith.constant 0 : i32
    %c0_i32_0 = arith.constant 0 : i32
    return %1, %c0_i32 : i32, i32
  }
  func.func @transform_1(%arg0: i32, %arg1: i32) -> (i32, i32) {
    %c0_i32 = arith.constant 0 : i32
    %c0_i32_0 = arith.constant 0 : i32
    return %arg0, %c0_i32 : i32, i32
  }
  func.func @transform_2(%arg0: i32, %arg1: i32) -> (i32, i32) {
    %c0_i32 = arith.constant 0 : i32
    %c0_i32_0 = arith.constant 0 : i32
    return %arg0, %c0_i32 : i32, i32
  }
}

</mosaic_0001>

<llo_original>
// kernel: tpu_custom_call.1
$region0: #{tpu_custom_call.1}
  #allocation0 [shape = 'u32[]', space=smem, size = 0x4, offset = 0x4, fixed_abs, tag = 'smem constant byte address 0x4 - core index']
  #allocation1 [shape = 'u32[144,128]{1,0:T(1,128)}', space=vmem, size = 0x12000, scoped, tag = 'internal scratch']
  %s0 = inlined_call_operand.vmem [shape: bf16[512,4], index: 0, kind: input, shape index: {}]
  %s1 = inlined_call_operand.vmem [shape: f32[16,4], index: 1, kind: output, shape index: {0}]
  %s2 = inlined_call_operand.vmem [shape: f32[16,4], index: 2, kind: output, shape index: {1}]
  %3 = xla_tuple %s1, %s2
  %s4 = sld [smem:[#allocation0]]
  $region49: #{tpu_custom_call.1} parent=0
    _
  %s6 = ssub.s32 1, %s4
  %s7 = scalar_select 0, %s6, %s4
  loop: start=0, step=1, limit=6
  $region2: #{tpu_custom_call.1} parent=0 // loop_pre_header
    _
  $region3: #{tpu_custom_call.1} parent=0 // loop_header
    %s9 = sphi 0, %s13
    %p10 = scmp.ge.s32.totalorder %s9, 6
    %s16 = sphi 0, %s28
    %s17 = sphi 0, %s24
    %s18 = sphi 0, %s16
    %s19 = sphi 0, %s17
    %s20 = sphi 0, %s18
    %s21 = sphi 0, %s19
    %s35 = sphi 0, %s37
    %s38 = sphi 0, %s35
    %s39 = sphi 0, %s38
    %s55 = sphi 0, %s39
    %s61 = sphi 0, %s63
    %s64 = sphi 0, %s61
    %s65 = sphi 0, %s64
    %s81 = sphi 0, %s65
    %s87 = sphi 0, %s89
    %s90 = sphi 0, %s87
    %s91 = sphi 0, %s90
    %s107 = sphi 0, %s91
  $region4: #{tpu_custom_call.1} parent=0 // loop_header_branch
    %12 = sbr.rel (%p10) target = $region8
  $region5: #{tpu_custom_call.1} parent=0 // loop_body
    %s14 = ssub.s32 %s9, 1
    %s15 = ssub.s32 %s9, 2
    %s22 = sadd.s32 1, %s17
    %p23 = scmp.ge.s32.totalorder %s22, 2
    %s24 = scalar_select %p23, 0, %s22
    %s25 = sadd.s32 1, %s16
    %s26 = scalar_select %p23, %s25, %s16
    %p27 = scmp.ge.s32.totalorder %s26, 2
    %s28 = scalar_select %p27, 0, %s26
    %s29 = smul.u32 %s16, 2
    %s30 = sadd.s32 %s29, %s17
    %s31 = smul.u32 %s28, 2
    %s32 = sadd.s32 %s31, %s24
    %s33 = ssub.s32 %s30, %s32
    %p34 = scmp.eq.s32.totalorder %s33, 0
    %s36 = sadd.s32 %s35, 1
    %s37 = scalar_select %p34, %s35, %s36
    %p40 = pneg %p34
    %p41 = scmp.eq.s32.totalorder %s9, 3
    %p42 = por %p40, %p41
    %p43 = scmp.ne.s32.totalorder %s35, %s38
    %p44 = scmp.eq.s32.totalorder %s9, 0
    %p45 = por %p43, %p44
    %p46 = scmp.ne.s32.totalorder %s35, %s38
    %p47 = scmp.eq.s32.totalorder %s14, 3
    %p48 = por %p46, %p47
    %p49 = scmp.ne.s32.totalorder %s38, %s39
    %p50 = scmp.eq.s32.totalorder %s14, 0
    %p51 = por %p49, %p50
    %p52 = scmp.ne.s32.totalorder %s38, %s39
    %p53 = scmp.eq.s32.totalorder %s15, 3
    %p54 = por %p52, %p53
    %p56 = scmp.ne.s32.totalorder %s39, %s55
    %p57 = scmp.eq.s32.totalorder %s15, 0
    %p58 = por %p56, %p57
    %s59 = ssub.s32 %s16, %s28
    %p60 = scmp.eq.s32.totalorder %s59, 0
    %s62 = sadd.s32 %s61, 1
    %s63 = scalar_select %p60, %s61, %s62
    %p66 = pneg %p60
    %p67 = scmp.eq.s32.totalorder %s9, 3
    %p68 = por %p66, %p67
    %p69 = scmp.ne.s32.totalorder %s61, %s64
    %p70 = scmp.eq.s32.totalorder %s9, 0
    %p71 = por %p69, %p70
    %p72 = scmp.ne.s32.totalorder %s61, %s64
    %p73 = scmp.eq.s32.totalorder %s14, 3
    %p74 = por %p72, %p73
    %p75 = scmp.ne.s32.totalorder %s64, %s65
    %p76 = scmp.eq.s32.totalorder %s14, 0
    %p77 = por %p75, %p76
    %p78 = scmp.ne.s32.totalorder %s64, %s65
    %p79 = scmp.eq.s32.totalorder %s15, 3
    %p80 = por %p78, %p79
    %p82 = scmp.ne.s32.totalorder %s65, %s81
    %p83 = scmp.eq.s32.totalorder %s15, 0
    %p84 = por %p82, %p83
    %s85 = ssub.s32 %s16, %s28
    %p86 = scmp.eq.s32.totalorder %s85, 0
    %s88 = sadd.s32 %s87, 1
    %s89 = scalar_select %p86, %s87, %s88
    %p92 = pneg %p86
    %p93 = scmp.eq.s32.totalorder %s9, 3
    %p94 = por %p92, %p93
    %p95 = scmp.ne.s32.totalorder %s87, %s90
    %p96 = scmp.eq.s32.totalorder %s9, 0
    %p97 = por %p95, %p96
    %p98 = scmp.ne.s32.totalorder %s87, %s90
    %p99 = scmp.eq.s32.totalorder %s14, 3
    %p100 = por %p98, %p99
    %p101 = scmp.ne.s32.totalorder %s90, %s91
    %p102 = scmp.eq.s32.totalorder %s14, 0
    %p103 = por %p101, %p102
    %p104 = scmp.ne.s32.totalorder %s90, %s91
    %p105 = scmp.eq.s32.totalorder %s15, 3
    %p106 = por %p104, %p105
    %p108 = scmp.ne.s32.totalorder %s91, %s107
    %p109 = scmp.eq.s32.totalorder %s15, 0
    %p110 = por %p108, %p109
    %p111 = scmp.le.s32.totalorder 1, %s9
    %p112 = scmp.lt.s32.totalorder %s9, 5
    %p113 = pnand %p111, %p112
    %p114 = pneg %p113
    // Predicated region
    $region9: #{tpu_custom_call.1} parent=5 // pred_check
      _
    $region10: #{tpu_custom_call.1} parent=5 // pred_check_branch
      %116 = sbr.rel (%p113) target = $region12
    $region11: #{tpu_custom_call.1} parent=5 // pred_region
      %s117 = ssub.s32 %s9, 1
    $region12: #{tpu_custom_call.1} parent=5 // pred_fallthru
      _
    %p118 = scmp.lt.s32.totalorder %s9, 4
    // Predicated region
    $region13: #{tpu_custom_call.1} parent=5 // pred_check
      %p119 = pneg %p118
    $region14: #{tpu_custom_call.1} parent=5 // pred_check_branch
      %121 = sbr.rel (%p119) target = $region16
    $region15: #{tpu_custom_call.1} parent=5 // pred_region
      // Predicated region
      $region17: #{tpu_custom_call.1} parent=15 // pred_check
        %p122 = pneg %p45
      $region18: #{tpu_custom_call.1} parent=15 // pred_check_branch
        %124 = sbr.rel (%p122) target = $region20
      $region19: #{tpu_custom_call.1} parent=15 // pred_region
        %s125 = smul.u32 %s16, 2
        %s126 = sadd.s32 %s125, %s17
        %s127 = smul.u32 16, %s126
        %p128 = scmp.lt.s32.totalorder %s127, 63
        %s129 = scalar_select %p128, %s127, 63
        %s130 = smul.addr %s129, 4
        %s131 = scalar_lea.vmem %s0, %s130
        %s132 = smul.u32 %s16, 2
        %s133 = sadd.s32 %s132, %s17
        %s134 = smul.u32 16, %s133
      $region20: #{tpu_custom_call.1} parent=15 // pred_fallthru
        _
    $region16: #{tpu_custom_call.1} parent=5 // pred_fallthru
      _
    %p135 = scmp.le.s32.totalorder 1, %s9
    %p136 = scmp.lt.s32.totalorder %s9, 5
    %p137 = pnand %p135, %p136
    %p138 = pneg %p137
    // Predicated region
    $region21: #{tpu_custom_call.1} parent=5 // pred_check
      _
    $region22: #{tpu_custom_call.1} parent=5 // pred_check_branch
      %140 = sbr.rel (%p137) target = $region24
    $region23: #{tpu_custom_call.1} parent=5 // pred_region
      %s141 = ssub.s32 %s9, 1
      %s142 = smul.u32 %s18, 2
      %s143 = sadd.s32 %s142, %s19
      %s144 = smul.u32 16, %s143
      %p145 = scmp.lt.s32.totalorder %s144, 63
      %s146 = scalar_select %p145, %s144, 63
      %s147 = smul.addr %s146, 4
      %s148 = scalar_lea.vmem %s0, %s147
      %p149 = pneg %p51
      %p150 = pneg %p48
      %p151 = pneg %p77
      %p152 = pneg %p74
      %p153 = scmp.lt.s32.totalorder %s18, 1
      %s154 = scalar_select %p153, %s18, 1
      %s155 = smul.addr %s154, 8
      %s156 = scalar_lea.vmem %s1, %s155
      %p157 = pneg %p103
      %p158 = pneg %p100
      %p159 = scmp.lt.s32.totalorder %s18, 1
      %s160 = scalar_select %p159, %s18, 1
      %s161 = smul.addr %s160, 8
      %s162 = scalar_lea.vmem %s2, %s161
      %s163 = smul.u32 %s18, 2
      %s164 = sadd.s32 %s163, %s19
      %s165 = smul.u32 16, %s164
      %p166 = scmp.lt.s32.totalorder %s165, 63
      %s167 = scalar_select %p166, %s165, 63
      %s168 = smul.addr %s167, 4
      %s169 = scalar_lea.vmem %s0, %s168
      %s170 = smul.u32 %s18, 2
      %s171 = sadd.s32 %s170, %s19
      %s172 = smul.u32 16, %s171
      %p173 = scmp.lt.s32.totalorder %s18, 1
      %s174 = scalar_select %p173, %s18, 1
      %s175 = smul.addr %s174, 8
      %s176 = scalar_lea.vmem %s1, %s175
      %p177 = scmp.lt.s32.totalorder %s18, 1
      %s178 = scalar_select %p177, %s18, 1
      %s179 = smul.addr %s178, 8
      %s180 = scalar_lea.vmem %s2, %s179
      %p181 = scmp.eq.s32.totalorder %s19, 0
      // Predicated region
      $region25: #{tpu_custom_call.1} parent=23 // pred_check
        %p182 = pneg %p181
      $region26: #{tpu_custom_call.1} parent=23 // pred_check_branch
        %184 = sbr.rel (%p182) target = $region28
      $region27: #{tpu_custom_call.1} parent=23 // pred_region
        %vm185 = vcmask 31744
        %186 = vst.msk [vmem:[%s176] sm:$0xff] %vm185, 0.0
        %187 = vst.msk [vmem:[%s180] sm:$0xff] %vm185, 0.0
      $region28: #{tpu_custom_call.1} parent=23 // pred_fallthru
        _
      %v188 = vld [vmem:[%s169] sm:$0xf]
      %v189 = vld [vmem:[%s169 + $0x4] sm:$0xf]
      %v190 = vld [vmem:[%s169 + $0x8] sm:$0xf]
      %v191 = vld [vmem:[%s169 + $0xc] sm:$0xf]
      %v192 = vld [vmem:[%s169 + $0x10] sm:$0xf]
      %v193 = vld [vmem:[%s169 + $0x14] sm:$0xf]
      %v194 = vld [vmem:[%s169 + $0x18] sm:$0xf]
      %v195 = vld [vmem:[%s169 + $0x1c] sm:$0xf]
      %v196 = vld [vmem:[%s169 + $0x20] sm:$0xf]
      %v197 = vld [vmem:[%s169 + $0x24] sm:$0xf]
      %v198 = vld [vmem:[%s169 + $0x28] sm:$0xf]
      %v199 = vld [vmem:[%s169 + $0x2c] sm:$0xf]
      %v200 = vld [vmem:[%s169 + $0x30] sm:$0xf]
      %v201 = vld [vmem:[%s169 + $0x34] sm:$0xf]
      %v202 = vld [vmem:[%s169 + $0x38] sm:$0xf]
      %v203 = vld [vmem:[%s169 + $0x3c] sm:$0xf]
      %v204 = vunpack.c.l.bf16 %v188
      %v205 = vunpack.c.l.bf16 %v189
      %v206 = vunpack.c.l.bf16 %v190
      %v207 = vunpack.c.l.bf16 %v191
      %v208 = vunpack.c.l.bf16 %v192
      %v209 = vunpack.c.l.bf16 %v193
      %v210 = vunpack.c.l.bf16 %v194
      %v211 = vunpack.c.l.bf16 %v195
      %v212 = vunpack.c.l.bf16 %v196
      %v213 = vunpack.c.l.bf16 %v197
      %v214 = vunpack.c.l.bf16 %v198
      %v215 = vunpack.c.l.bf16 %v199
      %v216 = vunpack.c.l.bf16 %v200
      %v217 = vunpack.c.l.bf16 %v201
      %v218 = vunpack.c.l.bf16 %v202
      %v219 = vunpack.c.l.bf16 %v203
      %v220 = vld [vmem:[%s176] sm:$0xff]
      %vm221 = vcmask 31744
      %v222 = vsel %vm221, %v204, 0.0
      %v223 = vsel %vm221, %v205, 0.0
      %v224 = vadd.f32 %v222, %v223
      %v225 = vsel %vm221, %v206, 0.0
      %v226 = vadd.f32 %v224, %v225
      %v227 = vsel %vm221, %v207, 0.0
      %v228 = vadd.f32 %v226, %v227
      %v229 = vsel %vm221, %v208, 0.0
      %v230 = vadd.f32 %v228, %v229
      %v231 = vsel %vm221, %v209, 0.0
      %v232 = vadd.f32 %v230, %v231
      %v233 = vsel %vm221, %v210, 0.0
      %v234 = vadd.f32 %v232, %v233
      %v235 = vsel %vm221, %v211, 0.0
      %v236 = vadd.f32 %v234, %v235
      %v237 = vsel %vm221, %v212, 0.0
      %v238 = vadd.f32 %v236, %v237
      %v239 = vsel %vm221, %v213, 0.0
      %v240 = vadd.f32 %v238, %v239
      %v241 = vsel %vm221, %v214, 0.0
      %v242 = vadd.f32 %v240, %v241
      %v243 = vsel %vm221, %v215, 0.0
      %v244 = vadd.f32 %v242, %v243
      %v245 = vsel %vm221, %v216, 0.0
      %v246 = vadd.f32 %v244, %v245
      %v247 = vsel %vm221, %v217, 0.0
      %v248 = vadd.f32 %v246, %v247
      %v249 = vsel %vm221, %v218, 0.0
      %v250 = vadd.f32 %v248, %v249
      %v251 = vsel %vm221, %v219, 0.0
      %v252 = vadd.f32 %v250, %v251
      %v253 = vadd.f32 %v220, %v252
      %254 = vst.msk [vmem:[%s176] sm:$0xff] %vm221, %v253
      %v255 = vld [vmem:[%s180] sm:$0xff]
      %v256 = vmul.f32 %v204, %v204
      %v257 = vmul.f32 %v205, %v205
      %v258 = vmul.f32 %v206, %v206
      %v259 = vmul.f32 %v207, %v207
      %v260 = vmul.f32 %v208, %v208
      %v261 = vmul.f32 %v209, %v209
      %v262 = vmul.f32 %v210, %v210
      %v263 = vmul.f32 %v211, %v211
      %v264 = vmul.f32 %v212, %v212
      %v265 = vmul.f32 %v213, %v213
      %v266 = vmul.f32 %v214, %v214
      %v267 = vmul.f32 %v215, %v215
      %v268 = vmul.f32 %v216, %v216
      %v269 = vmul.f32 %v217, %v217
      %v270 = vmul.f32 %v218, %v218
      %v271 = vmul.f32 %v219, %v219
      %v272 = vsel %vm221, %v256, 0.0
      %v273 = vsel %vm221, %v257, 0.0
      %v274 = vadd.f32 %v272, %v273
      %v275 = vsel %vm221, %v258, 0.0
      %v276 = vadd.f32 %v274, %v275
      %v277 = vsel %vm221, %v259, 0.0
      %v278 = vadd.f32 %v276, %v277
      %v279 = vsel %vm221, %v260, 0.0
      %v280 = vadd.f32 %v278, %v279
      %v281 = vsel %vm221, %v261, 0.0
      %v282 = vadd.f32 %v280, %v281
      %v283 = vsel %vm221, %v262, 0.0
      %v284 = vadd.f32 %v282, %v283
      %v285 = vsel %vm221, %v263, 0.0
      %v286 = vadd.f32 %v284, %v285
      %v287 = vsel %vm221, %v264, 0.0
      %v288 = vadd.f32 %v286, %v287
      %v289 = vsel %vm221, %v265, 0.0
      %v290 = vadd.f32 %v288, %v289
      %v291 = vsel %vm221, %v266, 0.0
      %v292 = vadd.f32 %v290, %v291
      %v293 = vsel %vm221, %v267, 0.0
      %v294 = vadd.f32 %v292, %v293
      %v295 = vsel %vm221, %v268, 0.0
      %v296 = vadd.f32 %v294, %v295
      %v297 = vsel %vm221, %v269, 0.0
      %v298 = vadd.f32 %v296, %v297
      %v299 = vsel %vm221, %v270, 0.0
      %v300 = vadd.f32 %v298, %v299
      %v301 = vsel %vm221, %v271, 0.0
      %v302 = vadd.f32 %v300, %v301
      %v303 = vadd.f32 %v255, %v302
      %304 = vst.msk [vmem:[%s180] sm:$0xff] %vm221, %v303
      %p305 = scmp.lt.s32.totalorder %s18, 1
      %s306 = scalar_select %p305, %s18, 1
      %s307 = smul.addr %s306, 8
      %s308 = scalar_lea.vmem %s1, %s307
      %p309 = scmp.lt.s32.totalorder %s18, 1
      %s310 = scalar_select %p309, %s18, 1
      %s311 = smul.addr %s310, 8
      %s312 = scalar_lea.vmem %s2, %s311
      // Predicated region
      $region29: #{tpu_custom_call.1} parent=23 // pred_check
        %p313 = pneg %p74
      $region30: #{tpu_custom_call.1} parent=23 // pred_check_branch
        %315 = sbr.rel (%p313) target = $region32
      $region31: #{tpu_custom_call.1} parent=23 // pred_region
        _
      $region32: #{tpu_custom_call.1} parent=23 // pred_fallthru
        _
      // Predicated region
      $region33: #{tpu_custom_call.1} parent=23 // pred_check
        %p316 = pneg %p100
      $region34: #{tpu_custom_call.1} parent=23 // pred_check_branch
        %318 = sbr.rel (%p316) target = $region36
      $region35: #{tpu_custom_call.1} parent=23 // pred_region
        _
      $region36: #{tpu_custom_call.1} parent=23 // pred_fallthru
        _
    $region24: #{tpu_custom_call.1} parent=5 // pred_fallthru
      _
    %p319 = scmp.le.s32.totalorder 2, %s9
    // Predicated region
    $region37: #{tpu_custom_call.1} parent=5 // pred_check
      %p320 = pneg %p319
    $region38: #{tpu_custom_call.1} parent=5 // pred_check_branch
      %322 = sbr.rel (%p320) target = $region40
    $region39: #{tpu_custom_call.1} parent=5 // pred_region
      %s323 = ssub.s32 %s9, 2
      // Predicated region
      $region41: #{tpu_custom_call.1} parent=39 // pred_check
        %p324 = pneg %p80
      $region42: #{tpu_custom_call.1} parent=39 // pred_check_branch
        %326 = sbr.rel (%p324) target = $region44
      $region43: #{tpu_custom_call.1} parent=39 // pred_region
        %p327 = scmp.lt.s32.totalorder %s20, 1
        %s328 = scalar_select %p327, %s20, 1
        %s329 = smul.addr %s328, 8
        %s330 = scalar_lea.vmem %s1, %s329
      $region44: #{tpu_custom_call.1} parent=39 // pred_fallthru
        _
      // Predicated region
      $region45: #{tpu_custom_call.1} parent=39 // pred_check
        %p331 = pneg %p106
      $region46: #{tpu_custom_call.1} parent=39 // pred_check_branch
        %333 = sbr.rel (%p331) target = $region48
      $region47: #{tpu_custom_call.1} parent=39 // pred_region
        %p334 = scmp.lt.s32.totalorder %s20, 1
        %s335 = scalar_select %p334, %s20, 1
        %s336 = smul.addr %s335, 8
        %s337 = scalar_lea.vmem %s2, %s336
      $region48: #{tpu_custom_call.1} parent=39 // pred_fallthru
        _
    $region40: #{tpu_custom_call.1} parent=5 // pred_fallthru
      _
  $region6: #{tpu_custom_call.1} parent=0 // loop_footer
    %s13 = sadd.s32 1, %s9
  $region7: #{tpu_custom_call.1} parent=0 // loop_footer_branch
    %8 = sbr.rel target = $region3
  $region8: #{tpu_custom_call.1} parent=0 // loop_exit
    _

</llo_original>
